<compile_context>
chip_gen: v6e
topology: v6e:2x2x1
jax: 0.10.0
libtpu: 0.0.40
codegen_flags: <defaults>
</compile_context>

<pallas_src>
import math
import functools

import jax
import jax.numpy as jnp
from jax import lax
from jax.experimental import pallas as pl
from jax.experimental.pallas import tpu as pltpu


LANE = 128            # lane width: pad F and C up to multiples of this
DEFAULT_TILE_N = 512  # row tile (capped to the problem size for tiny inputs)


def _round_up(x, m):
    return ((x + m - 1) // m) * m


def _pad2d(x, rows, cols):
    r, c = x.shape
    return jnp.pad(x, ((0, rows - r), (0, cols - c)))


# ---------------------------------------------------------------------------
# Kernels
# ---------------------------------------------------------------------------

def _match_infer_kernel(sidx_ref, cval_ref, feat_ref, schema_ref, raw_ref, msg_ref):
    """Inference: att = softmax(feat @ schema) over the first c_valid classes."""
    del sidx_ref  # only consumed by the index_maps
    c_valid = cval_ref[pl.program_id(0)]          # SMEM scalar: true #classes of this tile

    feat = feat_ref[...]                          # (tile, F_pad)
    schema = schema_ref[0]                        # (F_pad, C_pad)

    raw = jnp.dot(feat, schema, preferred_element_type=jnp.float32)   # (tile, C_pad)
    raw_ref[...] = raw.astype(raw_ref.dtype)      # padded cols are exactly 0

    # Row softmax over the valid classes only (padded lanes -> -inf -> exp 0).
    col = lax.broadcasted_iota(jnp.int32, raw.shape, 1)
    masked = jnp.where(col < c_valid, raw, -jnp.inf)
    m = jnp.max(masked, axis=1, keepdims=True)
    e = jnp.exp(masked - m)
    denom = jnp.sum(e, axis=1, keepdims=True)
    att = e * pl.reciprocal(denom, approx=True)   # EUP vrcp, off the VALU path

    # msg = att @ schema.T without an explicit transpose: contract class axes.
    msg = lax.dot_general(att, schema,
                          dimension_numbers=(((1,), (1,)), ((), ())),
                          preferred_element_type=jnp.float32)          # (tile, F_pad)
    msg_ref[...] = msg.astype(msg_ref.dtype)


def _match_train_kernel(sidx_ref, cval_ref, feat_ref, schema_ref, gt_ref, raw_ref, msg_ref):
    """Training: att = gt_dist (detached); msg = gt_dist @ schema.T."""
    del sidx_ref, cval_ref
    feat = feat_ref[...]
    schema = schema_ref[0]

    raw = jnp.dot(feat, schema, preferred_element_type=jnp.float32)
    raw_ref[...] = raw.astype(raw_ref.dtype)

    msg = lax.dot_general(gt_ref[...], schema,
                          dimension_numbers=(((1,), (1,)), ((), ())),
                          preferred_element_type=jnp.float32)
    msg_ref[...] = msg.astype(msg_ref.dtype)


# ---------------------------------------------------------------------------
# Fused wrapper: one pallas_call for both the edge and the node path
# ---------------------------------------------------------------------------

@functools.partial(jax.jit, static_argnames=("is_training", "tile_n"))
def _fused_send_message(edge_emb, edge_schema, gt_edge,
                        node_emb, node_schema, gt_node,
                        is_training, tile_n=DEFAULT_TILE_N):
    n_e, f_e = edge_emb.shape
    n_n, f_n = node_emb.shape
    c_e = edge_schema.shape[1]
    c_n = node_schema.shape[1]
    dtype = edge_emb.dtype

    # Lane-dense padded dims shared by both paths.
    f_pad = _round_up(max(f_e, f_n), LANE)
    c_pad = _round_up(max(c_e, c_n), LANE)

    # Row tile: big enough to pipeline, capped for tiny problems (multiple of 8).
    tile = min(tile_n, _round_up(max(n_e, n_n), 8))
    t_e = pl.cdiv(n_e, tile)
    t_n = pl.cdiv(n_n, tile)
    rows_e = t_e * tile
    rows_n = t_n * tile
    num_tiles = t_e + t_n

    # Concatenate edge rows then node rows (zero padded to tile multiples / lane width).
    feat_all = jnp.concatenate(
        [_pad2d(edge_emb, rows_e, f_pad), _pad2d(node_emb, rows_n, f_pad)], axis=0)
    schema_stack = jnp.stack(
        [_pad2d(edge_schema, f_pad, c_pad), _pad2d(node_schema, f_pad, c_pad)], axis=0)

    # Scalar-prefetch tables: which schema and how many valid classes per row tile.
    sidx = jnp.concatenate([jnp.zeros((t_e,), jnp.int32), jnp.ones((t_n,), jnp.int32)])
    cval = jnp.concatenate([jnp.full((t_e,), c_e, jnp.int32),
                            jnp.full((t_n,), c_n, jnp.int32)])

    out_shape = (
        jax.ShapeDtypeStruct((num_tiles * tile, c_pad), dtype),   # raw_att (stacked)
        jax.ShapeDtypeStruct((num_tiles * tile, f_pad), dtype),   # schema_msg (stacked)
    )

    feat_spec = pl.BlockSpec((tile, f_pad), lambda i, s, c: (i, 0))
    schema_spec = pl.BlockSpec((1, f_pad, c_pad), lambda i, s, c: (s[i], 0, 0))
    gt_spec = pl.BlockSpec((tile, c_pad), lambda i, s, c: (i, 0))
    out_specs = (
        pl.BlockSpec((tile, c_pad), lambda i, s, c: (i, 0)),
        pl.BlockSpec((tile, f_pad), lambda i, s, c: (i, 0)),
    )

    compiler_params = pltpu.CompilerParams(
        dimension_semantics=("parallel",),        # shard row tiles across TCs on v7x
        vmem_limit_bytes=32 * 1024 * 1024,
    )

    if is_training:
        gt_all = jnp.concatenate(
            [_pad2d(gt_edge, rows_e, c_pad), _pad2d(gt_node, rows_n, c_pad)], axis=0)
        raw_all, msg_all = pl.pallas_call(
            _match_train_kernel,
            out_shape=out_shape,
            grid_spec=pltpu.PrefetchScalarGridSpec(
                num_scalar_prefetch=2,
                grid=(num_tiles,),
                in_specs=[feat_spec, schema_spec, gt_spec],
                out_specs=out_specs),
            compiler_params=compiler_params,
        )(sidx, cval, feat_all, schema_stack, gt_all)
    else:
        raw_all, msg_all = pl.pallas_call(
            _match_infer_kernel,
            out_shape=out_shape,
            grid_spec=pltpu.PrefetchScalarGridSpec(
                num_scalar_prefetch=2,
                grid=(num_tiles,),
                in_specs=[feat_spec, schema_spec],
                out_specs=out_specs),
            compiler_params=compiler_params,
        )(sidx, cval, feat_all, schema_stack)

    # Slice padded / stacked outputs back to the original shapes.
    raw_edge = raw_all[:n_e, :c_e]
    msg_edge = msg_all[:n_e, :f_e]
    raw_node = raw_all[rows_e:rows_e + n_n, :c_n]
    msg_node = msg_all[rows_e:rows_e + n_n, :f_n]
    return raw_edge, msg_edge, raw_node, msg_node


# ---------------------------------------------------------------------------
# Match module (parameter init + forward glue)
# ---------------------------------------------------------------------------

def _xavier_normal(key, shape, gain):
    fan_in, fan_out = shape
    std = gain * math.sqrt(2.0 / (fan_in + fan_out))
    return std * jax.random.normal(key, shape, dtype=jnp.float32)


class Match:
    def __init__(self, in_edge_feats, n_edge_classes, in_node_feats, n_node_classes,
                 sigmoid_uncertainty=False, key=None):
        self._in_edge_feats = in_edge_feats
        self.n_edge_classes = n_edge_classes
        self._in_node_feats = in_node_feats
        self.n_node_classes = n_node_classes
        self.sigmoid_uncertainty = sigmoid_uncertainty
        if key is None:
            key = jax.random.PRNGKey(0)
        k_edge, k_node = jax.random.split(key)
        # nn.init.calculate_gain('leaky_relu', 0.2) = sqrt(2 / (1 + 0.2^2))
        gain = math.sqrt(2.0 / (1.0 + 0.2 ** 2))
        self.edges_schema = _xavier_normal(k_edge, (in_edge_feats, n_edge_classes), gain)
        self.nodes_schema = _xavier_normal(k_node, (in_node_feats, n_node_classes), gain)

    def forward(self, node_emb, edge_emb, is_training, gt_node_dists, gt_edge_dists,
                node_destroy_index=None, edge_destroy_index=None, gt=False):
        # destroy_index / gt_schema are unused by the reference forward as well.
        raw_edge_class, h_edge_emb, raw_node_class, h_node_emb = _fused_send_message(
            edge_emb, self.edges_schema, gt_edge_dists,
            node_emb, self.nodes_schema, gt_node_dists,
            bool(is_training))
        return raw_edge_class, h_edge_emb, raw_node_class, h_node_emb


# ---------------------------------------------------------------------------
# Plain-JAX reference + test
# ---------------------------------------------------------------------------

def _ref_send_message(feat, schema, gt_dist, is_training):
    raw = feat @ schema
    att = gt_dist if is_training else jax.nn.softmax(raw, axis=1)
    return raw, att @ schema.T


if __name__ == "__main__":
    key = jax.random.PRNGKey(0)
    k_param, k_node, k_edge, k_gtn, k_gte = jax.random.split(key, 5)

    # Small deterministic shapes (F and C intentionally different per path).
    in_node_feats, n_node_classes = 32, 8
    in_edge_feats, n_edge_classes = 48, 16
    num_nodes, num_edges = 12, 20

    model = Match(in_edge_feats, n_edge_classes, in_node_feats, n_node_classes, key=k_param)

    node_emb = jax.random.normal(k_node, (num_nodes, in_node_feats), dtype=jnp.float32)
    edge_emb = jax.random.normal(k_edge, (num_edges, in_edge_feats), dtype=jnp.float32)
    gt_node_dists = jax.nn.softmax(
        jax.random.normal(k_gtn, (num_nodes, n_node_classes), dtype=jnp.float32), axis=1)
    gt_edge_dists = jax.nn.softmax(
        jax.random.normal(k_gte, (num_edges, n_edge_classes), dtype=jnp.float32), axis=1)

    # Inference path (softmax inside kernel).
    out_infer = model.forward(node_emb, edge_emb, False, gt_node_dists, gt_edge_dists)
    out_infer = jax.block_until_ready(out_infer)

    # Training path (gt_dist message passing).
    out_train = model.forward(node_emb, edge_emb, True, gt_node_dists, gt_edge_dists)
    out_train = jax.block_until_ready(out_train)

    # Sanity check vs plain-JAX reference (tolerance covers approx reciprocal in softmax).
    tol = dict(atol=2e-3, rtol=2e-3)
    ref_re, ref_he = _ref_send_message(edge_emb, model.edges_schema, gt_edge_dists, False)
    ref_rn, ref_hn = _ref_send_message(node_emb, model.nodes_schema, gt_node_dists, False)
    assert jnp.allclose(out_infer[0], ref_re, **tol)
    assert jnp.allclose(out_infer[1], ref_he, **tol)
    assert jnp.allclose(out_infer[2], ref_rn, **tol)
    assert jnp.allclose(out_infer[3], ref_hn, **tol)

    ref_re_t, ref_he_t = _ref_send_message(edge_emb, model.edges_schema, gt_edge_dists, True)
    ref_rn_t, ref_hn_t = _ref_send_message(node_emb, model.nodes_schema, gt_node_dists, True)
    assert jnp.allclose(out_train[0], ref_re_t, **tol)
    assert jnp.allclose(out_train[1], ref_he_t, **tol)
    assert jnp.allclose(out_train[2], ref_rn_t, **tol)
    assert jnp.allclose(out_train[3], ref_hn_t, **tol)

    print("KERNEL_OK")
</pallas_src>

<mosaic_0001>
module attributes {stable_mosaic.version = 11 : i64} {
  func.func @_match_infer_kernel(%arg0: i32, %arg1: memref<2xi32, #tpu.memory_space<smem>>, %arg2: memref<2xi32, #tpu.memory_space<smem>>, %arg3: memref<24x128xf32, #tpu.memory_space<vmem>>, %arg4: memref<1x128x128xf32, #tpu.memory_space<vmem>>, %arg5: memref<24x128xf32, #tpu.memory_space<vmem>>, %arg6: memref<24x128xf32, #tpu.memory_space<vmem>>) attributes {dimension_semantics = [#tpu.dimension_semantics<parallel>], iteration_bounds = array<i64: 2>, scalar_prefetch = 2 : i64, scratch_operands = 0 : i64, tpu.core_type = #tpu.core_type<tc>, window_params = [{transform_indices = @transform_0, window_bounds = array<i64: 24, 128>}, {transform_indices = @transform_1, window_bounds = array<i64: 1, 128, 128>}, {transform_indices = @transform_2, window_bounds = array<i64: 24, 128>}, {transform_indices = @transform_3, window_bounds = array<i64: 24, 128>}]} {
    %0 = arith.index_cast %arg0 : i32 to index
    %1 = memref.load %arg2[%0] : memref<2xi32, #tpu.memory_space<smem>>
    %c0 = arith.constant 0 : index
    %c0_0 = arith.constant 0 : index
    %2 = vector.load %arg3[%c0, %c0_0] : memref<24x128xf32, #tpu.memory_space<vmem>>, vector<24x128xf32>
    %c0_1 = arith.constant 0 : index
    %c0_2 = arith.constant 0 : index
    %c0_3 = arith.constant 0 : index
    %3 = vector.load %arg4[%c0_1, %c0_2, %c0_3] : memref<1x128x128xf32, #tpu.memory_space<vmem>>, vector<1x128x128xf32>
    %4 = vector.shape_cast %3 : vector<1x128x128xf32> to vector<128x128xf32>
    %cst = arith.constant dense<0.000000e+00> : vector<24x128xf32>
    %5 = tpu.matmul %2, %4, %cst {dimension_numbers = #tpu.dot_dimension_numbers<[1], [0], [0], [1], [0, 0, 1, 1], [], []>} : vector<24x128xf32>, vector<128x128xf32>, vector<24x128xf32> -> vector<24x128xf32>
    %c0_4 = arith.constant 0 : index
    %c0_5 = arith.constant 0 : index
    %6 = vector.load %arg5[%c0_4, %c0_5] : memref<24x128xf32, #tpu.memory_space<vmem>>, vector<24x128xf32>
    tpu.vector_store %arg5[%c0_4, %c0_5], %5 {strides = array<i32>} : memref<24x128xf32, #tpu.memory_space<vmem>>, vector<24x128xf32>,
    %7 = tpu.iota {dimensions = array<i32: 1>} : vector<24x128xi32>
    %8 = vector.broadcast %1 : i32 to vector<24x128xi32>
    %9 = arith.cmpi slt, %7, %8 : vector<24x128xi32>
    %cst_6 = arith.constant 0xFF800000 : f32
    %10 = vector.broadcast %cst_6 : f32 to vector<24x128xf32>
    %11 = arith.select %9, %5, %10 : vector<24x128xi1>, vector<24x128xf32>
    %cst_7 = arith.constant dense<0xFF800000> : vector<24xf32>
    %12 = vector.multi_reduction <maximumf>, %11, %cst_7 [1] : vector<24x128xf32> to vector<24xf32>
    %13 = vector.shape_cast %12 : vector<24xf32> to vector<24x1xf32>
    %14 = vector.broadcast %13 : vector<24x1xf32> to vector<24x128xf32>
    %15 = arith.subf %11, %14 : vector<24x128xf32>
    %16 = math.exp %15 : vector<24x128xf32>
    %cst_8 = arith.constant dense<0.000000e+00> : vector<24xf32>
    %17 = vector.multi_reduction <add>, %16, %cst_8 [1] : vector<24x128xf32> to vector<24xf32>
    %18 = vector.shape_cast %17 : vector<24xf32> to vector<24x1xf32>
    %19 = tpu.reciprocal %18 {approx = true} : vector<24x1xf32> -> vector<24x1xf32>
    %20 = vector.broadcast %19 : vector<24x1xf32> to vector<24x128xf32>
    %21 = arith.mulf %16, %20 : vector<24x128xf32>
    %cst_9 = arith.constant dense<0.000000e+00> : vector<24x128xf32>
    %22 = tpu.matmul %21, %4, %cst_9 {dimension_numbers = #tpu.dot_dimension_numbers<[1], [1], [0], [0], [0, 0, 1, 0], [], []>} : vector<24x128xf32>, vector<128x128xf32>, vector<24x128xf32> -> vector<24x128xf32>
    %c0_10 = arith.constant 0 : index
    %c0_11 = arith.constant 0 : index
    %23 = vector.load %arg6[%c0_10, %c0_11] : memref<24x128xf32, #tpu.memory_space<vmem>>, vector<24x128xf32>
    tpu.vector_store %arg6[%c0_10, %c0_11], %22 {strides = array<i32>} : memref<24x128xf32, #tpu.memory_space<vmem>>, vector<24x128xf32>,
    return
  }
  func.func @transform_0(%arg0: i32, %arg1: memref<2xi32, #tpu.memory_space<smem>>, %arg2: memref<2xi32, #tpu.memory_space<smem>>) -> (i32, i32) {
    %c0_i32 = arith.constant 0 : i32
    %c0_i32_0 = arith.constant 0 : i32
    return %arg0, %c0_i32 : i32, i32
  }
  func.func @transform_1(%arg0: i32, %arg1: memref<2xi32, #tpu.memory_space<smem>>, %arg2: memref<2xi32, #tpu.memory_space<smem>>) -> (i32, i32, i32) {
    %0 = arith.index_cast %arg0 : i32 to index
    %1 = memref.load %arg1[%0] : memref<2xi32, #tpu.memory_space<smem>>
    %c0_i32 = arith.constant 0 : i32
    %c0_i32_0 = arith.constant 0 : i32
    %c0_i32_1 = arith.constant 0 : i32
    return %1, %c0_i32, %c0_i32_0 : i32, i32, i32
  }
  func.func @transform_2(%arg0: i32, %arg1: memref<2xi32, #tpu.memory_space<smem>>, %arg2: memref<2xi32, #tpu.memory_space<smem>>) -> (i32, i32) {
    %c0_i32 = arith.constant 0 : i32
    %c0_i32_0 = arith.constant 0 : i32
    return %arg0, %c0_i32 : i32, i32
  }
  func.func @transform_3(%arg0: i32, %arg1: memref<2xi32, #tpu.memory_space<smem>>, %arg2: memref<2xi32, #tpu.memory_space<smem>>) -> (i32, i32) {
    %c0_i32 = arith.constant 0 : i32
    %c0_i32_0 = arith.constant 0 : i32
    return %arg0, %c0_i32 : i32, i32
  }
}

</mosaic_0001>

<llo_original>
// kernel: _fused_send_message.1
$region0: #{_fused_send_message.1}
  #allocation0 [shape = 'u32[]', space=smem, size = 0x4, offset = 0x4, fixed_abs, tag = 'smem constant byte address 0x4 - core index']
  #allocation1 [shape = 'u32[144,128]{1,0:T(1,128)}', space=vmem, size = 0x12000, scoped, tag = 'internal scratch']
  #allocation2 [shape = 's32[1]{0}', space=sflag, size = 0x4, scoped, tag = 'scoped memory for _fused_send_message.1']
  #allocation3 [shape = 'u8[512]{0}', space=smem, size = 0x200, scoped, tag = 'prefetched SMEM operand 0']
  #allocation4 [shape = 'u8[512]{0}', space=smem, size = 0x200, scoped, tag = 'prefetched SMEM operand 1']
  %s0 = inlined_call_operand.vmem [shape: s32[2], index: 0, kind: input, shape index: {}]
  %s1 = inlined_call_operand.vmem [shape: s32[2], index: 1, kind: input, shape index: {}]
  %s2 = inlined_call_operand.vmem [shape: f32[48,128], index: 2, kind: input, shape index: {}]
  %s3 = inlined_call_operand.vmem [shape: f32[2,128,128], index: 3, kind: input, shape index: {}]
  %s4 = inlined_call_operand.vmem [shape: f32[48,128], index: 4, kind: output, shape index: {0}]
  %s5 = inlined_call_operand.vmem [shape: f32[48,128], index: 5, kind: output, shape index: {1}]
  %6 = xla_tuple %s4, %s5
  %s7 = sld [smem:[#allocation0]]
  $region49: #{_fused_send_message.1} parent=0
    _
  %s9 = ssub.s32 1, %s7
  %s10 = scalar_select 0, %s9, %s7
  %s11 = sshll.u32 %s0, 4
  %s12 = int_to_ptr.vmem [resolvable:$true] %s11
  %14 = dma.vmem_to_smem %s12, 16, [#allocation3], [#allocation2]
  %s15 = sshll.u32 %s1, 4
  %s16 = int_to_ptr.vmem [resolvable:$true] %s15
  %18 = dma.vmem_to_smem %s16, 16, [#allocation4], [#allocation2]
  %19 = dma.done [#allocation2], 32
  %20 = sfence
  loop: start=0, step=1, limit=4
  $region2: #{_fused_send_message.1} parent=0 // loop_pre_header
    _
  $region3: #{_fused_send_message.1} parent=0 // loop_header
    %s22 = sphi 0, %s26
    %p23 = scmp.ge.s32.totalorder %s22, 4
    %s32 = sphi 0, %s34
    %s35 = sphi 0, %s32
    %s36 = sphi 0, %s35
    %s52 = sphi 0, %s36
    %s60 = sphi 0, %s62
    %s63 = sphi 0, %s60
    %s64 = sphi 0, %s63
    %s80 = sphi 0, %s64
    %s86 = sphi 0, %s88
    %s89 = sphi 0, %s86
    %s90 = sphi 0, %s89
    %s106 = sphi 0, %s90
    %s112 = sphi 0, %s114
    %s115 = sphi 0, %s112
    %s116 = sphi 0, %s115
    %s132 = sphi 0, %s116
  $region4: #{_fused_send_message.1} parent=0 // loop_header_branch
    %25 = sbr.rel (%p23) target = $region8
  $region5: #{_fused_send_message.1} parent=0 // loop_body
    %s27 = ssub.s32 %s22, 1
    %s28 = ssub.s32 %s22, 2
    %s29 = sadd.s32 %s22, 1
    %s30 = ssub.s32 %s22, %s29
    %p31 = scmp.eq.s32.totalorder %s30, 0
    %s33 = sadd.s32 %s32, 1
    %s34 = scalar_select %p31, %s32, %s33
    %p37 = pneg %p31
    %p38 = scmp.eq.s32.totalorder %s22, 1
    %p39 = por %p37, %p38
    %p40 = scmp.ne.s32.totalorder %s32, %s35
    %p41 = scmp.eq.s32.totalorder %s22, 0
    %p42 = por %p40, %p41
    %p43 = scmp.ne.s32.totalorder %s32, %s35
    %p44 = scmp.eq.s32.totalorder %s27, 1
    %p45 = por %p43, %p44
    %p46 = scmp.ne.s32.totalorder %s35, %s36
    %p47 = scmp.eq.s32.totalorder %s27, 0
    %p48 = por %p46, %p47
    %p49 = scmp.ne.s32.totalorder %s35, %s36
    %p50 = scmp.eq.s32.totalorder %s28, 1
    %p51 = por %p49, %p50
    %p53 = scmp.ne.s32.totalorder %s36, %s52
    %p54 = scmp.eq.s32.totalorder %s28, 0
    %p55 = por %p53, %p54
    %s56 = sld [smem:[#allocation3 + %s22]]
    %s57 = sld [smem:[#allocation3 + %s29]]
    %s58 = ssub.s32 %s56, %s57
    %p59 = scmp.eq.s32.totalorder %s58, 0
    %s61 = sadd.s32 %s60, 1
    %s62 = scalar_select %p59, %s60, %s61
    %p65 = pneg %p59
    %p66 = scmp.eq.s32.totalorder %s22, 1
    %p67 = por %p65, %p66
    %p68 = scmp.ne.s32.totalorder %s60, %s63
    %p69 = scmp.eq.s32.totalorder %s22, 0
    %p70 = por %p68, %p69
    %p71 = scmp.ne.s32.totalorder %s60, %s63
    %p72 = scmp.eq.s32.totalorder %s27, 1
    %p73 = por %p71, %p72
    %p74 = scmp.ne.s32.totalorder %s63, %s64
    %p75 = scmp.eq.s32.totalorder %s27, 0
    %p76 = por %p74, %p75
    %p77 = scmp.ne.s32.totalorder %s63, %s64
    %p78 = scmp.eq.s32.totalorder %s28, 1
    %p79 = por %p77, %p78
    %p81 = scmp.ne.s32.totalorder %s64, %s80
    %p82 = scmp.eq.s32.totalorder %s28, 0
    %p83 = por %p81, %p82
    %s84 = ssub.s32 %s22, %s29
    %p85 = scmp.eq.s32.totalorder %s84, 0
    %s87 = sadd.s32 %s86, 1
    %s88 = scalar_select %p85, %s86, %s87
    %p91 = pneg %p85
    %p92 = scmp.eq.s32.totalorder %s22, 1
    %p93 = por %p91, %p92
    %p94 = scmp.ne.s32.totalorder %s86, %s89
    %p95 = scmp.eq.s32.totalorder %s22, 0
    %p96 = por %p94, %p95
    %p97 = scmp.ne.s32.totalorder %s86, %s89
    %p98 = scmp.eq.s32.totalorder %s27, 1
    %p99 = por %p97, %p98
    %p100 = scmp.ne.s32.totalorder %s89, %s90
    %p101 = scmp.eq.s32.totalorder %s27, 0
    %p102 = por %p100, %p101
    %p103 = scmp.ne.s32.totalorder %s89, %s90
    %p104 = scmp.eq.s32.totalorder %s28, 1
    %p105 = por %p103, %p104
    %p107 = scmp.ne.s32.totalorder %s90, %s106
    %p108 = scmp.eq.s32.totalorder %s28, 0
    %p109 = por %p107, %p108
    %s110 = ssub.s32 %s22, %s29
    %p111 = scmp.eq.s32.totalorder %s110, 0
    %s113 = sadd.s32 %s112, 1
    %s114 = scalar_select %p111, %s112, %s113
    %p117 = pneg %p111
    %p118 = scmp.eq.s32.totalorder %s22, 1
    %p119 = por %p117, %p118
    %p120 = scmp.ne.s32.totalorder %s112, %s115
    %p121 = scmp.eq.s32.totalorder %s22, 0
    %p122 = por %p120, %p121
    %p123 = scmp.ne.s32.totalorder %s112, %s115
    %p124 = scmp.eq.s32.totalorder %s27, 1
    %p125 = por %p123, %p124
    %p126 = scmp.ne.s32.totalorder %s115, %s116
    %p127 = scmp.eq.s32.totalorder %s27, 0
    %p128 = por %p126, %p127
    %p129 = scmp.ne.s32.totalorder %s115, %s116
    %p130 = scmp.eq.s32.totalorder %s28, 1
    %p131 = por %p129, %p130
    %p133 = scmp.ne.s32.totalorder %s116, %s132
    %p134 = scmp.eq.s32.totalorder %s28, 0
    %p135 = por %p133, %p134
    %p136 = scmp.le.s32.totalorder 1, %s22
    %p137 = scmp.lt.s32.totalorder %s22, 3
    %p138 = pnand %p136, %p137
    %p139 = pneg %p138
    // Predicated region
    $region9: #{_fused_send_message.1} parent=5 // pred_check
      _
    $region10: #{_fused_send_message.1} parent=5 // pred_check_branch
      %141 = sbr.rel (%p138) target = $region12
    $region11: #{_fused_send_message.1} parent=5 // pred_region
      %s142 = ssub.s32 %s22, 1
    $region12: #{_fused_send_message.1} parent=5 // pred_fallthru
      _
    %p143 = scmp.lt.s32.totalorder %s22, 2
    // Predicated region
    $region13: #{_fused_send_message.1} parent=5 // pred_check
      %p144 = pneg %p143
    $region14: #{_fused_send_message.1} parent=5 // pred_check_branch
      %146 = sbr.rel (%p144) target = $region16
    $region15: #{_fused_send_message.1} parent=5 // pred_region
      // Predicated region
      $region17: #{_fused_send_message.1} parent=15 // pred_check
        %p147 = pneg %p42
      $region18: #{_fused_send_message.1} parent=15 // pred_check_branch
        %149 = sbr.rel (%p147) target = $region20
      $region19: #{_fused_send_message.1} parent=15 // pred_region
        %s150 = smul.u32 3, %s22
        %p151 = scmp.lt.s32.totalorder %s150, 5
        %s152 = scalar_select %p151, %s150, 5
        %s153 = smul.addr %s152, 8
        %s154 = scalar_lea.vmem %s2, %s153
        %s155 = smul.u32 3, %s22
      $region20: #{_fused_send_message.1} parent=15 // pred_fallthru
        _
      // Predicated region
      $region21: #{_fused_send_message.1} parent=15 // pred_check
        %p156 = pneg %p70
      $region22: #{_fused_send_message.1} parent=15 // pred_check_branch
        %158 = sbr.rel (%p156) target = $region24
      $region23: #{_fused_send_message.1} parent=15 // pred_region
        %s159 = sld [smem:[#allocation3 + %s22]]
        %p160 = scmp.lt.s32.totalorder %s159, 1
        %s161 = scalar_select %p160, %s159, 1
        %s162 = smul.addr %s161, 16
        %s163 = smul.addr %s162, 8
        %s164 = scalar_lea.vmem %s3, %s163
        %s165 = sld [smem:[#allocation3 + %s22]]
      $region24: #{_fused_send_message.1} parent=15 // pred_fallthru
        _
    $region16: #{_fused_send_message.1} parent=5 // pred_fallthru
      _
    %p166 = scmp.le.s32.totalorder 1, %s22
    %p167 = scmp.lt.s32.totalorder %s22, 3
    %p168 = pnand %p166, %p167
    %p169 = pneg %p168
    // Predicated region
    $region25: #{_fused_send_message.1} parent=5 // pred_check
      _
    $region26: #{_fused_send_message.1} parent=5 // pred_check_branch
      %171 = sbr.rel (%p168) target = $region28
    $region27: #{_fused_send_message.1} parent=5 // pred_region
      %s172 = ssub.s32 %s22, 1
      %s173 = smul.u32 3, %s27
      %p174 = scmp.lt.s32.totalorder %s173, 5
      %s175 = scalar_select %p174, %s173, 5
      %s176 = smul.addr %s175, 8
      %s177 = scalar_lea.vmem %s2, %s176
      %p178 = pneg %p48
      %p179 = pneg %p45
      %s180 = sld [smem:[#allocation3 + %s27]]
      %p181 = scmp.lt.s32.totalorder %s180, 1
      %s182 = scalar_select %p181, %s180, 1
      %s183 = smul.addr %s182, 16
      %s184 = smul.addr %s183, 8
      %s185 = scalar_lea.vmem %s3, %s184
      %p186 = pneg %p76
      %p187 = pneg %p73
      %p188 = pneg %p102
      %p189 = pneg %p99
      %s190 = smul.u32 3, %s27
      %p191 = scmp.lt.s32.totalorder %s190, 5
      %s192 = scalar_select %p191, %s190, 5
      %s193 = smul.addr %s192, 8
      %s194 = scalar_lea.vmem %s4, %s193
      %p195 = pneg %p128
      %p196 = pneg %p125
      %s197 = smul.u32 3, %s27
      %p198 = scmp.lt.s32.totalorder %s197, 5
      %s199 = scalar_select %p198, %s197, 5
      %s200 = smul.addr %s199, 8
      %s201 = scalar_lea.vmem %s5, %s200
      %s202 = smul.u32 3, %s27
      %p203 = scmp.lt.s32.totalorder %s202, 5
      %s204 = scalar_select %p203, %s202, 5
      %s205 = smul.addr %s204, 8
      %s206 = scalar_lea.vmem %s2, %s205
      %s207 = smul.u32 3, %s27
      %s208 = sld [smem:[#allocation3 + %s27]]
      %p209 = scmp.lt.s32.totalorder %s208, 1
      %s210 = scalar_select %p209, %s208, 1
      %s211 = smul.addr %s210, 16
      %s212 = smul.addr %s211, 8
      %s213 = scalar_lea.vmem %s3, %s212
      %s214 = sld [smem:[#allocation3 + %s27]]
      %s215 = smul.u32 3, %s27
      %p216 = scmp.lt.s32.totalorder %s215, 5
      %s217 = scalar_select %p216, %s215, 5
      %s218 = smul.addr %s217, 8
      %s219 = scalar_lea.vmem %s4, %s218
      %s220 = smul.u32 3, %s27
      %s221 = smul.u32 3, %s27
      %p222 = scmp.lt.s32.totalorder %s221, 5
      %s223 = scalar_select %p222, %s221, 5
      %s224 = smul.addr %s223, 8
      %s225 = scalar_lea.vmem %s5, %s224
      %s226 = smul.u32 3, %s27
      %s227 = sld [smem:[#allocation4 + %s27]]
      %v228 = vld [vmem:[%s206] sm:$0xff]
      %v229 = vld [vmem:[%s206 + $0x8] sm:$0xff]
      %v230 = vld [vmem:[%s206 + $0x10] sm:$0xff]
      %v231 = vld [vmem:[%s213] sm:$0xff]
      %v232 = vld [vmem:[%s213 + $0x8] sm:$0xff]
      %v233 = vld [vmem:[%s213 + $0x10] sm:$0xff]
      %v234 = vld [vmem:[%s213 + $0x18] sm:$0xff]
      %v235 = vld [vmem:[%s213 + $0x20] sm:$0xff]
      %v236 = vld [vmem:[%s213 + $0x28] sm:$0xff]
      %v237 = vld [vmem:[%s213 + $0x30] sm:$0xff]
      %v238 = vld [vmem:[%s213 + $0x38] sm:$0xff]
      %v239 = vld [vmem:[%s213 + $0x40] sm:$0xff]
      %v240 = vld [vmem:[%s213 + $0x48] sm:$0xff]
      %v241 = vld [vmem:[%s213 + $0x50] sm:$0xff]
      %v242 = vld [vmem:[%s213 + $0x58] sm:$0xff]
      %v243 = vld [vmem:[%s213 + $0x60] sm:$0xff]
      %v244 = vld [vmem:[%s213 + $0x68] sm:$0xff]
      %v245 = vld [vmem:[%s213 + $0x70] sm:$0xff]
      %v246 = vld [vmem:[%s213 + $0x78] sm:$0xff]
      %247 = vmatprep.subr.mxu0 0.0
      %248 = vmatpush1.msra.mxu0 %v246
      %249 = vmatprep.subr.mxu0 0.0
      %250 = vmatpush1.msra.mxu0 %v245
      %251 = vmatprep.subr.mxu0 0.0
      %252 = vmatpush1.msra.mxu0 %v244
      %253 = vmatprep.subr.mxu0 0.0
      %254 = vmatpush1.msra.mxu0 %v243
      %255 = vmatprep.subr.mxu0 0.0
      %256 = vmatpush1.msra.mxu0 %v242
      %257 = vmatprep.subr.mxu0 0.0
      %258 = vmatpush1.msra.mxu0 %v241
      %259 = vmatprep.subr.mxu0 0.0
      %260 = vmatpush1.msra.mxu0 %v240
      %261 = vmatprep.subr.mxu0 0.0
      %262 = vmatpush1.msra.mxu0 %v239
      %263 = vmatprep.subr.mxu0 0.0
      %264 = vmatpush1.msra.mxu0 %v238
      %265 = vmatprep.subr.mxu0 0.0
      %266 = vmatpush1.msra.mxu0 %v237
      %267 = vmatprep.subr.mxu0 0.0
      %268 = vmatpush1.msra.mxu0 %v236
      %269 = vmatprep.subr.mxu0 0.0
      %270 = vmatpush1.msra.mxu0 %v235
      %271 = vmatprep.subr.mxu0 0.0
      %272 = vmatpush1.msra.mxu0 %v234
      %273 = vmatprep.subr.mxu0 0.0
      %274 = vmatpush1.msra.mxu0 %v233
      %275 = vmatprep.subr.mxu0 0.0
      %276 = vmatpush1.msra.mxu0 %v232
      %277 = vmatprep.subr.mxu0 0.0
      %278 = vmatpush1.msra.mxu0 %v231
      %279 = vmatprep.subr.mxu0 0.0
      %280 = vmatpush2.msra.mxu0 0.0
      %281 = vmatprep.subr.mxu0 0.0
      %282 = vmatpush2.msra.mxu0 0.0
      %283 = vmatprep.subr.mxu0 0.0
      %284 = vmatpush2.msra.mxu0 0.0
      %285 = vmatprep.subr.mxu0 0.0
      %286 = vmatpush2.msra.mxu0 0.0
      %287 = vmatprep.subr.mxu0 0.0
      %288 = vmatpush2.msra.mxu0 0.0
      %289 = vmatprep.subr.mxu0 0.0
      %290 = vmatpush2.msra.mxu0 0.0
      %291 = vmatprep.subr.mxu0 0.0
      %292 = vmatpush2.msra.mxu0 0.0
      %293 = vmatprep.subr.mxu0 0.0
      %294 = vmatpush2.msra.mxu0 0.0
      %295 = vmatprep.subr.mxu0 0.0
      %296 = vmatpush2.msra.mxu0 0.0
      %297 = vmatprep.subr.mxu0 0.0
      %298 = vmatpush2.msra.mxu0 0.0
      %299 = vmatprep.subr.mxu0 0.0
      %300 = vmatpush2.msra.mxu0 0.0
      %301 = vmatprep.subr.mxu0 0.0
      %302 = vmatpush2.msra.mxu0 0.0
      %303 = vmatprep.subr.mxu0 0.0
      %304 = vmatpush2.msra.mxu0 0.0
      %305 = vmatprep.subr.mxu0 0.0
      %306 = vmatpush2.msra.mxu0 0.0
      %307 = vmatprep.subr.mxu0 0.0
      %308 = vmatpush2.msra.mxu0 0.0
      %309 = vmatprep.subr.mxu0 0.0
      %310 = vmatpush2.msra.mxu0 0.0
      %311 = vmatprep.mubr.f32.mxu0 0.0
      %312 = vmatmul.mubr.f32.gmra.mxu0 %v228
      %v313 = vpop.f32.mrf.mxu0
      %v314 = vadd.f32 0.0, %v313
      %v315 = vpop.f32.mrf.mxu0
      %316 = vmatprep.mubr.f32.mxu0 0.0
      %317 = vmatmul.mubr.f32.gmra.mxu0 %v229
      %v318 = vpop.f32.mrf.mxu0
      %v319 = vadd.f32 0.0, %v318
      %v320 = vpop.f32.mrf.mxu0
      %321 = vmatprep.mubr.f32.mxu0 0.0
      %322 = vmatmul.mubr.f32.gmra.mxu0 %v230
      %v323 = vpop.f32.mrf.mxu0
      %v324 = vadd.f32 0.0, %v323
      %v325 = vpop.f32.mrf.mxu0
      %326 = vdwg.mxu0
      %327 = vst [vmem:[%s219] sm:$0xff] %v314
      %328 = vst [vmem:[%s219 + $0x8] sm:$0xff] %v319
      %329 = vst [vmem:[%s219 + $0x10] sm:$0xff] %v324
      %v330 = vlaneseq
      %v331 = vand.u32 %v330, 127
      %v332 = vstv %s227
      %vm333 = vcmp.lt.s32.totalorder %v331, %v332
      %v334 = vsel %vm333, %v314, -inf
      %v335 = vsel %vm333, %v319, -inf
      %v336 = vsel %vm333, %v324, -inf
      %337 = vmax.xlane.f32.xlu0 %v334
      %v338 = vpop.xlane.xlu0 %337
      %339 = vmax.xlane.f32.xlu0 %v335
      %v340 = vpop.xlane.xlu0 %339
      %341 = vmax.xlane.f32.xlu0 %v336
      %v342 = vpop.xlane.xlu0 %341
      %v343 = vsub.f32 %v334, %v338
      %v344 = vsub.f32 %v335, %v340
      %v345 = vsub.f32 %v336, %v342
      %v346 = vmul.f32 %v343, 1.442695
      %v347 = vpow.pop %v346
      %v348 = vmul.f32 %v344, 1.442695
      %v349 = vpow.pop %v348
      %v350 = vmul.f32 %v345, 1.442695
      %v351 = vpow.pop %v350
      %352 = vadd.xlane.f32.xlu0 %v347
      %v353 = vpop.xlane.xlu0 %352
      %354 = vadd.xlane.f32.xlu0 %v349
      %v355 = vpop.xlane.xlu0 %354
      %356 = vadd.xlane.f32.xlu0 %v351
      %v357 = vpop.xlane.xlu0 %356
      %v358 = vrcp.pop %v353
      %v359 = vrcp.pop %v355
      %v360 = vrcp.pop %v357
      %v361 = vmul.f32 %v347, %v358
      %v362 = vmul.f32 %v349, %v359
      %v363 = vmul.f32 %v351, %v360
      %364 = vmatprep.subr.mxu0 0.0
      %365 = vmatpush1.xpose.msra.mxu0 %v246
      %366 = vmatprep.subr.mxu0 0.0
      %367 = vmatpush1.xpose.msra.mxu0 %v245
      %368 = vmatprep.subr.mxu0 0.0
      %369 = vmatpush1.xpose.msra.mxu0 %v244
      %370 = vmatprep.subr.mxu0 0.0
      %371 = vmatpush1.xpose.msra.mxu0 %v243
      %372 = vmatprep.subr.mxu0 0.0
      %373 = vmatpush1.xpose.msra.mxu0 %v242
      %374 = vmatprep.subr.mxu0 0.0
      %375 = vmatpush1.xpose.msra.mxu0 %v241
      %376 = vmatprep.subr.mxu0 0.0
      %377 = vmatpush1.xpose.msra.mxu0 %v240
      %378 = vmatprep.subr.mxu0 0.0
      %379 = vmatpush1.xpose.msra.mxu0 %v239
      %380 = vmatprep.subr.mxu0 0.0
      %381 = vmatpush1.xpose.msra.mxu0 %v238
      %382 = vmatprep.subr.mxu0 0.0
      %383 = vmatpush1.xpose.msra.mxu0 %v237
      %384 = vmatprep.subr.mxu0 0.0
      %385 = vmatpush1.xpose.msra.mxu0 %v236
      %386 = vmatprep.subr.mxu0 0.0
      %387 = vmatpush1.xpose.msra.mxu0 %v235
      %388 = vmatprep.subr.mxu0 0.0
      %389 = vmatpush1.xpose.msra.mxu0 %v234
      %390 = vmatprep.subr.mxu0 0.0
      %391 = vmatpush1.xpose.msra.mxu0 %v233
      %392 = vmatprep.subr.mxu0 0.0
      %393 = vmatpush1.xpose.msra.mxu0 %v232
      %394 = vmatprep.subr.mxu0 0.0
      %395 = vmatpush1.xpose.msra.mxu0 %v231
      %396 = vmatprep.subr.mxu0 0.0
      %397 = vmatpush2.xpose.msra.mxu0 0.0
      %398 = vmatprep.subr.mxu0 0.0
      %399 = vmatpush2.xpose.msra.mxu0 0.0
      %400 = vmatprep.subr.mxu0 0.0
      %401 = vmatpush2.xpose.msra.mxu0 0.0
      %402 = vmatprep.subr.mxu0 0.0
      %403 = vmatpush2.xpose.msra.mxu0 0.0
      %404 = vmatprep.subr.mxu0 0.0
      %405 = vmatpush2.xpose.msra.mxu0 0.0
      %406 = vmatprep.subr.mxu0 0.0
      %407 = vmatpush2.xpose.msra.mxu0 0.0
      %408 = vmatprep.subr.mxu0 0.0
      %409 = vmatpush2.xpose.msra.mxu0 0.0
      %410 = vmatprep.subr.mxu0 0.0
      %411 = vmatpush2.xpose.msra.mxu0 0.0
      %412 = vmatprep.subr.mxu0 0.0
      %413 = vmatpush2.xpose.msra.mxu0 0.0
      %414 = vmatprep.subr.mxu0 0.0
      %415 = vmatpush2.xpose.msra.mxu0 0.0
      %416 = vmatprep.subr.mxu0 0.0
      %417 = vmatpush2.xpose.msra.mxu0 0.0
      %418 = vmatprep.subr.mxu0 0.0
      %419 = vmatpush2.xpose.msra.mxu0 0.0
      %420 = vmatprep.subr.mxu0 0.0
      %421 = vmatpush2.xpose.msra.mxu0 0.0
      %422 = vmatprep.subr.mxu0 0.0
      %423 = vmatpush2.xpose.msra.mxu0 0.0
      %424 = vmatprep.subr.mxu0 0.0
      %425 = vmatpush2.xpose.msra.mxu0 0.0
      %426 = vmatprep.subr.mxu0 0.0
      %427 = vmatpush2.xpose.msra.mxu0 0.0
      %428 = vmatprep.mubr.f32.mxu0 0.0
      %429 = vmatmul.mubr.f32.gmra.mxu0 %v361
      %v430 = vpop.f32.mrf.mxu0
      %v431 = vadd.f32 0.0, %v430
      %v432 = vpop.f32.mrf.mxu0
      %433 = vmatprep.mubr.f32.mxu0 0.0
      %434 = vmatmul.mubr.f32.gmra.mxu0 %v362
      %v435 = vpop.f32.mrf.mxu0
      %v436 = vadd.f32 0.0, %v435
      %v437 = vpop.f32.mrf.mxu0
      %438 = vmatprep.mubr.f32.mxu0 0.0
      %439 = vmatmul.mubr.f32.gmra.mxu0 %v363
      %v440 = vpop.f32.mrf.mxu0
      %v441 = vadd.f32 0.0, %v440
      %v442 = vpop.f32.mrf.mxu0
      %443 = vdwg.mxu0
      %444 = vst [vmem:[%s225] sm:$0xff] %v431
      %445 = vst [vmem:[%s225 + $0x8] sm:$0xff] %v436
      %446 = vst [vmem:[%s225 + $0x10] sm:$0xff] %v441
      %s447 = smul.u32 3, %s27
      %p448 = scmp.lt.s32.totalorder %s447, 5
      %s449 = scalar_select %p448, %s447, 5
      %s450 = smul.addr %s449, 8
      %s451 = scalar_lea.vmem %s4, %s450
      %s452 = smul.u32 3, %s27
      %p453 = scmp.lt.s32.totalorder %s452, 5
      %s454 = scalar_select %p453, %s452, 5
      %s455 = smul.addr %s454, 8
      %s456 = scalar_lea.vmem %s5, %s455
      // Predicated region
      $region29: #{_fused_send_message.1} parent=27 // pred_check
        %p457 = pneg %p99
      $region30: #{_fused_send_message.1} parent=27 // pred_check_branch
        %459 = sbr.rel (%p457) target = $region32
      $region31: #{_fused_send_message.1} parent=27 // pred_region
        %s460 = smul.u32 3, %s27
      $region32: #{_fused_send_message.1} parent=27 // pred_fallthru
        _
      // Predicated region
      $region33: #{_fused_send_message.1} parent=27 // pred_check
        %p461 = pneg %p125
      $region34: #{_fused_send_message.1} parent=27 // pred_check_branch
        %463 = sbr.rel (%p461) target = $region36
      $region35: #{_fused_send_message.1} parent=27 // pred_region
        %s464 = smul.u32 3, %s27
      $region36: #{_fused_send_message.1} parent=27 // pred_fallthru
        _
    $region28: #{_fused_send_message.1} parent=5 // pred_fallthru
      _
    %p465 = scmp.le.s32.totalorder 2, %s22
    // Predicated region
    $region37: #{_fused_send_message.1} parent=5 // pred_check
      %p466 = pneg %p465
    $region38: #{_fused_send_message.1} parent=5 // pred_check_branch
      %468 = sbr.rel (%p466) target = $region40
    $region39: #{_fused_send_message.1} parent=5 // pred_region
      %s469 = ssub.s32 %s22, 2
      // Predicated region
      $region41: #{_fused_send_message.1} parent=39 // pred_check
        %p470 = pneg %p105
      $region42: #{_fused_send_message.1} parent=39 // pred_check_branch
        %472 = sbr.rel (%p470) target = $region44
      $region43: #{_fused_send_message.1} parent=39 // pred_region
        %s473 = smul.u32 3, %s28
        %p474 = scmp.lt.s32.totalorder %s473, 5
        %s475 = scalar_select %p474, %s473, 5
        %s476 = smul.addr %s475, 8
        %s477 = scalar_lea.vmem %s4, %s476
      $region44: #{_fused_send_message.1} parent=39 // pred_fallthru
        _
      // Predicated region
      $region45: #{_fused_send_message.1} parent=39 // pred_check
        %p478 = pneg %p131
      $region46: #{_fused_send_message.1} parent=39 // pred_check_branch
        %480 = sbr.rel (%p478) target = $region48
      $region47: #{_fused_send_message.1} parent=39 // pred_region
        %s481 = smul.u32 3, %s28
        %p482 = scmp.lt.s32.totalorder %s481, 5
        %s483 = scalar_select %p482, %s481, 5
        %s484 = smul.addr %s483, 8
        %s485 = scalar_lea.vmem %s5, %s484
      $region48: #{_fused_send_message.1} parent=39 // pred_fallthru
        _
    $region40: #{_fused_send_message.1} parent=5 // pred_fallthru
      _
  $region6: #{_fused_send_message.1} parent=0 // loop_footer
    %s26 = sadd.s32 1, %s22
  $region7: #{_fused_send_message.1} parent=0 // loop_footer_branch
    %21 = sbr.rel target = $region3
  $region8: #{_fused_send_message.1} parent=0 // loop_exit
    _

</llo_original>
